<compile_context>
chip_gen: v6e
topology: v6e:2x2x1
jax: 0.10.0
libtpu: 0.0.40
codegen_flags: <defaults>
</compile_context>

<pallas_src>
import functools
from math import sqrt

import jax
import jax.numpy as jnp
from jax.experimental import pallas as pl
from jax.experimental.pallas import tpu as pltpu


# Scoped-VMEM budget (bytes): above the 16/32 MiB defaults, <= ~48 MiB for v7x headroom.
_VMEM_LIMIT_BYTES = 48 * 1024 * 1024


# --------------------------------------------------------------------------------------
# Single-buffering probe for grid-invariant operands
# --------------------------------------------------------------------------------------
def _probe_copy_kernel(x_ref, o_ref):
    o_ref[...] = x_ref[...] * 2.0


@functools.cache
def _single_buffer_mode():
    """Extra BlockSpec kwargs that mark a grid-invariant operand single-buffered.

    Default pipelining keeps two VMEM copies of every input even when the
    index_map never changes; pl.Buffered(1) drops the second copy of the
    weights/bias.  Probed once so we fall back cleanly (default double
    buffering) if the installed toolchain rejects pipeline_mode / Buffered(1).
    """
    try:
        spec = pl.BlockSpec((8, 128), lambda i: (0, 0), pipeline_mode=pl.Buffered(1))
        out = pl.pallas_call(
            _probe_copy_kernel,
            out_shape=jax.ShapeDtypeStruct((8, 128), jnp.float32),
            grid=(2,),
            in_specs=[spec],
            out_specs=pl.BlockSpec((8, 128), lambda i: (0, 0)),
        )(jnp.ones((8, 128), jnp.float32))
        jax.block_until_ready(out)
        return {"pipeline_mode": pl.Buffered(1)}
    except Exception:  # any failure -> default double buffering
        return {}


# --------------------------------------------------------------------------------------
# Pass 1: lane-dense QKV projection  (B, N, D) @ (D, 3*H*dh) -> (B, N, 3*H*dh)
# --------------------------------------------------------------------------------------
def _qkv_proj_kernel(x_ref, w_ref, o_ref):
    # x_ref: (tn, D) bf16, w_ref: (D, 3*inner) bf16 (q columns pre-scaled), o_ref bf16
    o_ref[...] = jnp.dot(
        x_ref[...], w_ref[...], preferred_element_type=jnp.float32
    ).astype(o_ref.dtype)


def _qkv_projection(x_bf16, w_bf16, *, block_n):
    B, N, D = x_bf16.shape
    F = w_bf16.shape[1]
    tn = min(block_n, N)
    assert N % tn == 0, "sequence length must divide the projection tile size"
    sb = _single_buffer_mode()
    return pl.pallas_call(
        _qkv_proj_kernel,
        out_shape=jax.ShapeDtypeStruct((B, N, F), jnp.bfloat16),
        grid_spec=pltpu.PrefetchScalarGridSpec(
            num_scalar_prefetch=0,
            grid=(B, N // tn),
            in_specs=[
                pl.BlockSpec((None, tn, D), lambda b, i: (b, i, 0)),
                pl.BlockSpec((D, F), lambda b, i: (0, 0), **sb),  # fetched once
            ],
            out_specs=pl.BlockSpec((None, tn, F), lambda b, i: (b, i, 0)),
        ),
        compiler_params=pltpu.CompilerParams(
            dimension_semantics=("parallel", "parallel"),
            vmem_limit_bytes=_VMEM_LIMIT_BYTES,
        ),
    )(x_bf16, w_bf16)


# --------------------------------------------------------------------------------------
# Pass 2: head-batched flash attention + fused output projection
# --------------------------------------------------------------------------------------
def _flash_attn_kernel(q_ref, k_ref, v_ref, wo_ref, bo_ref, o_ref, acc_s, m_s, l_s):
    # q_ref : (H, tq, dh) bf16  (scale already folded in)
    # k_ref : (H, tk, dh) bf16
    # v_ref : (H, tk, dh) bf16
    # wo_ref: (H, dh, D)  bf16
    # bo_ref: (1, D)      f32
    # o_ref : (tq, D)
    # scratch: acc_s (H, tq, dh) f32, m_s / l_s (H, tq, 1) f32
    #   (the last-dim-1 statistics cause masked lane stores; negligible next to
    #    the matmuls -- see review note, left as-is)
    ki = pl.program_id(2)

    @pl.when(ki == 0)
    def _init():
        m_s[...] = jnp.full(m_s.shape, -jnp.inf, dtype=m_s.dtype)
        l_s[...] = jnp.zeros(l_s.shape, dtype=l_s.dtype)
        acc_s[...] = jnp.zeros(acc_s.shape, dtype=acc_s.dtype)

    # scores: (H, tq, tk), bf16 x bf16 with f32 accumulation on the MXU
    s = jnp.einsum("hqe,hke->hqk", q_ref[...], k_ref[...],
                   preferred_element_type=jnp.float32)

    # online softmax (f32 statistics; f32 exp keeps v5e compatibility)
    m_prev = m_s[...]
    m_new = jnp.maximum(m_prev, jnp.max(s, axis=-1, keepdims=True))
    alpha = jnp.exp(m_prev - m_new)
    p = jnp.exp(s - m_new)
    l_s[...] = alpha * l_s[...] + jnp.sum(p, axis=-1, keepdims=True)
    acc_s[...] = alpha * acc_s[...] + jnp.einsum(
        "hqk,hke->hqe", p.astype(jnp.bfloat16), v_ref[...],
        preferred_element_type=jnp.float32)
    m_s[...] = m_new

    @pl.when(ki == pl.num_programs(2) - 1)
    def _finalize():
        inv_l = pl.reciprocal(l_s[...], approx=True)            # EUP slot
        out_h = (acc_s[...] * inv_l).astype(jnp.bfloat16)       # (H, tq, dh)
        # fused head-concat + output projection:
        #   (H, tq, dh) @ (H, dh, D) -> (H, tq, D), reduced over heads, + bias
        y = jnp.einsum("hqe,heo->hqo", out_h, wo_ref[...],
                       preferred_element_type=jnp.float32)
        y = jnp.sum(y, axis=0) + bo_ref[...]                    # (tq, D)
        o_ref[...] = y.astype(o_ref.dtype)


def attention_forward(x, w_qkv, w_out, b_out, *, heads, dim_head,
                      block_q=256, block_k=256, block_proj=256):
    """x: (B, N, D); w_qkv: (D, 3*heads*dim_head); w_out: (heads*dim_head, D); b_out: (D,)."""
    B, N, D = x.shape
    inner = heads * dim_head
    scale = dim_head ** (-0.5)

    tq = min(block_q, N)
    tk = min(block_k, N)
    assert N % tq == 0 and N % tk == 0, "sequence length must divide the tile sizes"
    nq, nk = N // tq, N // tk

    # ---- one-time (plain JAX) parameter re-layout -------------------------------
    # Fold the 1/sqrt(dh) softmax scale into the q columns of the packed qkv weight
    # (in f32, before the bf16 cast) so no kernel ever re-scales.
    w_qkv_s = jnp.concatenate([w_qkv[:, :inner] * scale, w_qkv[:, inner:]], axis=-1)
    wo = w_out.reshape(heads, dim_head, D).astype(jnp.bfloat16)   # rows h*dh..(h+1)*dh -> head h
    bo = b_out.reshape(1, D).astype(jnp.float32)

    # ---- pass 1: lane-dense QKV projection (computed once per token) ------------
    qkv = _qkv_projection(x.astype(jnp.bfloat16), w_qkv_s.astype(jnp.bfloat16),
                          block_n=block_proj)

    # head split 'b n (c h d) -> b h n d' per chunk (cheap one-time XLA relayout)
    qkv = qkv.reshape(B, N, 3, heads, dim_head)
    q = qkv[:, :, 0].transpose(0, 2, 1, 3)   # (B, H, N, dh), scale already applied
    k = qkv[:, :, 1].transpose(0, 2, 1, 3)
    v = qkv[:, :, 2].transpose(0, 2, 1, 3)

    sb = _single_buffer_mode()

    return pl.pallas_call(
        _flash_attn_kernel,
        out_shape=jax.ShapeDtypeStruct((B, N, D), x.dtype),
        grid_spec=pltpu.PrefetchScalarGridSpec(
            num_scalar_prefetch=0,
            grid=(B, nq, nk),
            in_specs=[
                # q tile: constant across the kv axis -> fetched once per (b, qi)
                pl.BlockSpec((None, heads, tq, dim_head), lambda b, qi, ki: (b, 0, qi, 0)),
                # k / v tiles streamed along the kv (reduction, innermost) axis
                pl.BlockSpec((None, heads, tk, dim_head), lambda b, qi, ki: (b, 0, ki, 0)),
                pl.BlockSpec((None, heads, tk, dim_head), lambda b, qi, ki: (b, 0, ki, 0)),
                # grid-invariant output projection weight + bias (single-buffered)
                pl.BlockSpec((heads, dim_head, D), lambda b, qi, ki: (0, 0, 0), **sb),
                pl.BlockSpec((1, D), lambda b, qi, ki: (0, 0), **sb),
            ],
            out_specs=pl.BlockSpec((None, tq, D), lambda b, qi, ki: (b, qi, 0)),
            scratch_shapes=[
                pltpu.VMEM((heads, tq, dim_head), jnp.float32),   # acc
                pltpu.VMEM((heads, tq, 1), jnp.float32),          # running max m
                pltpu.VMEM((heads, tq, 1), jnp.float32),          # running sum l
            ],
        ),
        compiler_params=pltpu.CompilerParams(
            dimension_semantics=("parallel", "parallel", "arbitrary"),
            vmem_limit_bytes=_VMEM_LIMIT_BYTES,
        ),
    )(q, k, v, wo, bo)


# --------------------------------------------------------------------------------------
# Pure-JAX f32 reference mirroring the PyTorch forward (dropout = 0)
# --------------------------------------------------------------------------------------
def attention_reference(x, w_qkv, w_out, b_out, *, heads, dim_head):
    B, N, D = x.shape
    inner = heads * dim_head
    scale = dim_head ** (-0.5)
    qkv = x @ w_qkv                                         # (B, N, 3*inner)
    q, k, v = jnp.split(qkv, 3, axis=-1)

    def split_heads(t):                                     # b n (h d) -> b h n d
        return t.reshape(B, N, heads, dim_head).transpose(0, 2, 1, 3)

    q, k, v = map(split_heads, (q, k, v))
    dots = jnp.einsum("bhnd,bhmd->bhnm", q, k) * scale
    attn = jax.nn.softmax(dots, axis=-1)
    out = jnp.einsum("bhnm,bhmd->bhnd", attn, v)
    out = out.transpose(0, 2, 1, 3).reshape(B, N, inner)    # b h n d -> b n (h d)
    return out @ w_out + b_out


if __name__ == "__main__":
    # Small shapes consistent with the module's forward: x is (batch, seq, dim).
    B, N, dim = 2, 8, 32
    heads, dim_head = 4, 16
    inner = heads * dim_head

    key = jax.random.PRNGKey(0)
    kx, kqkv, kout, kb = jax.random.split(key, 4)

    x = jax.random.normal(kx, (B, N, dim), dtype=jnp.float32)

    # Deterministic parameter init mimicking nn.Linear's U(-1/sqrt(fan_in), 1/sqrt(fan_in)).
    b1 = 1.0 / sqrt(dim)
    w_qkv = jax.random.uniform(kqkv, (dim, 3 * inner), jnp.float32, -b1, b1)
    b2 = 1.0 / sqrt(inner)
    w_out = jax.random.uniform(kout, (inner, dim), jnp.float32, -b2, b2)
    b_out = jax.random.uniform(kb, (dim,), jnp.float32, -b2, b2)   # bias of to_out's Linear

    y = attention_forward(x, w_qkv, w_out, b_out, heads=heads, dim_head=dim_head)
    y = jax.block_until_ready(y)

    y_ref = attention_reference(x, w_qkv, w_out, b_out, heads=heads, dim_head=dim_head)
    assert y.shape == (B, N, dim)
    # bf16 MXU operands + approx reciprocal -> looser tolerance than pure f32.
    assert jnp.allclose(y, y_ref, atol=2e-2, rtol=2e-2), "mismatch vs JAX reference"

    print("KERNEL_OK")
</pallas_src>

<mosaic_0001>
module attributes {stable_mosaic.version = 11 : i64} {
  func.func @_probe_copy_kernel(%arg0: i32, %arg1: memref<8x128xf32, #tpu.memory_space<vmem>>, %arg2: memref<8x128xf32, #tpu.memory_space<vmem>>) attributes {dimension_semantics = [#tpu.dimension_semantics<arbitrary>], iteration_bounds = array<i64: 2>, scalar_prefetch = 0 : i64, scratch_operands = 0 : i64, tpu.core_type = #tpu.core_type<tc>, window_params = [{pipeline_mode = #tpu.pipeline_mode<synchronous>, transform_indices = @transform_0, window_bounds = array<i64: 8, 128>}, {pipeline_mode = #tpu.pipeline_mode<synchronous>, transform_indices = @transform_1, window_bounds = array<i64: 8, 128>}]} {
    %c0 = arith.constant 0 : index
    %c0_0 = arith.constant 0 : index
    %0 = vector.load %arg1[%c0, %c0_0] : memref<8x128xf32, #tpu.memory_space<vmem>>, vector<8x128xf32>
    %cst = arith.constant 2.000000e+00 : f32
    %1 = vector.broadcast %cst : f32 to vector<8x128xf32>
    %2 = arith.mulf %0, %1 : vector<8x128xf32>
    %c0_1 = arith.constant 0 : index
    %c0_2 = arith.constant 0 : index
    %3 = vector.load %arg2[%c0_1, %c0_2] : memref<8x128xf32, #tpu.memory_space<vmem>>, vector<8x128xf32>
    tpu.vector_store %arg2[%c0_1, %c0_2], %2 {strides = array<i32>} : memref<8x128xf32, #tpu.memory_space<vmem>>, vector<8x128xf32>,
    return
  }
  func.func @transform_0(%arg0: i32) -> (i32, i32) {
    %c0_i32 = arith.constant 0 : i32
    %c0_i32_0 = arith.constant 0 : i32
    %c0_i32_1 = arith.constant 0 : i32
    return %c0_i32, %c0_i32_0 : i32, i32
  }
  func.func @transform_1(%arg0: i32) -> (i32, i32) {
    %c0_i32 = arith.constant 0 : i32
    %c0_i32_0 = arith.constant 0 : i32
    %c0_i32_1 = arith.constant 0 : i32
    return %c0_i32, %c0_i32_0 : i32, i32
  }
}

module attributes {stable_mosaic.version = 11 : i64} {
  func.func @_qkv_proj_kernel(%arg0: i32, %arg1: i32, %arg2: memref<1x8x32xbf16, #tpu.memory_space<vmem>>, %arg3: memref<32x192xbf16, #tpu.memory_space<vmem>>, %arg4: memref<1x8x192xbf16, #tpu.memory_space<vmem>>) attributes {dimension_semantics = [#tpu.dimension_semantics<parallel>, #tpu.dimension_semantics<parallel>], iteration_bounds = array<i64: 2, 1>, scalar_prefetch = 0 : i64, scratch_operands = 0 : i64, tpu.core_type = #tpu.core_type<tc>, window_params = [{transform_indices = @transform_0, window_bounds = array<i64: 1, 8, 32>}, {pipeline_mode = #tpu.pipeline_mode<synchronous>, transform_indices = @transform_1, window_bounds = array<i64: 32, 192>}, {transform_indices = @transform_2, window_bounds = array<i64: 1, 8, 192>}]} {
    %c0 = arith.constant 0 : index
    %c0_0 = arith.constant 0 : index
    %c0_1 = arith.constant 0 : index
    %0 = vector.load %arg2[%c0, %c0_0, %c0_1] : memref<1x8x32xbf16, #tpu.memory_space<vmem>>, vector<1x8x32xbf16>
    %1 = vector.shape_cast %0 : vector<1x8x32xbf16> to vector<8x32xbf16>
    %c0_2 = arith.constant 0 : index
    %c0_3 = arith.constant 0 : index
    %2 = vector.load %arg3[%c0_2, %c0_3] : memref<32x192xbf16, #tpu.memory_space<vmem>>, vector<32x192xbf16>
    %cst = arith.constant dense<0.000000e+00> : vector<8x192xf32>
    %3 = tpu.matmul %1, %2, %cst {dimension_numbers = #tpu.dot_dimension_numbers<[1], [0], [0], [1], [0, 0, 1, 1], [], []>} : vector<8x32xbf16>, vector<32x192xbf16>, vector<8x192xf32> -> vector<8x192xf32>
    %4 = arith.truncf %3 : vector<8x192xf32> to vector<8x192xbf16>
    %c0_4 = arith.constant 0 : index
    %c0_5 = arith.constant 0 : index
    %c0_6 = arith.constant 0 : index
    %5 = vector.load %arg4[%c0_4, %c0_5, %c0_6] : memref<1x8x192xbf16, #tpu.memory_space<vmem>>, vector<1x8x192xbf16>
    %6 = vector.shape_cast %5 : vector<1x8x192xbf16> to vector<8x192xbf16>
    %7 = vector.shape_cast %4 : vector<8x192xbf16> to vector<1x8x192xbf16>
    tpu.vector_store %arg4[%c0_4, %c0_5, %c0_6], %7 {strides = array<i32>} : memref<1x8x192xbf16, #tpu.memory_space<vmem>>, vector<1x8x192xbf16>,
    return
  }
  func.func @transform_0(%arg0: i32, %arg1: i32) -> (i32, i32, i32) {
    %c0_i32 = arith.constant 0 : i32
    %c0_i32_0 = arith.constant 0 : i32
    return %arg0, %arg1, %c0_i32 : i32, i32, i32
  }
  func.func @transform_1(%arg0: i32, %arg1: i32) -> (i32, i32) {
    %c0_i32 = arith.constant 0 : i32
    %c0_i32_0 = arith.constant 0 : i32
    %c0_i32_1 = arith.constant 0 : i32
    return %c0_i32, %c0_i32_0 : i32, i32
  }
  func.func @transform_2(%arg0: i32, %arg1: i32) -> (i32, i32, i32) {
    %c0_i32 = arith.constant 0 : i32
    %c0_i32_0 = arith.constant 0 : i32
    return %arg0, %arg1, %c0_i32 : i32, i32, i32
  }
}

</mosaic_0001>

<llo_original>
// kernel: tpu_custom_call.1
$region0: #{tpu_custom_call.1}
  #allocation0 [shape = 'u32[]', space=smem, size = 0x4, offset = 0x4, fixed_abs, tag = 'smem constant byte address 0x4 - core index']
  #allocation1 [shape = 'u32[144,128]{1,0:T(1,128)}', space=vmem, size = 0x12000, scoped, tag = 'internal scratch']
  %s0 = inlined_call_operand.hbm [shape: f32[8,128], index: 0, kind: input, shape index: {}]
  %s1 = inlined_call_operand.hbm [shape: f32[8,128], index: 1, kind: output, shape index: {}]
  %s2 = sld [smem:[#allocation0]]
  $region41: #{tpu_custom_call.1} parent=0
    _
  %s4 = ssub.s32 1, %s2
  %s5 = scalar_select 0, %s4, %s2
  $region1: #{tpu_custom_call.1} parent=0
    #allocation2 [shape = 'u8[4096]{0}', space=vmem, size = 0x1000, scoped, tag = 'input window, operand 0, single buffered']
    #allocation3 [shape = 's32[2]{0}', space=sflag, size = 0x8, scoped, tag = 'scoped memory for tpu_custom_call.1']
    #allocation4 [shape = 's32[2]{0}', space=sflag, size = 0x8, scoped, tag = 'scoped memory for tpu_custom_call.1']
    #allocation5 [shape = 'u8[4096]{0}', space=vmem, size = 0x1000, scoped, tag = 'output window, operand 0, single buffered']
    %6 = vsyncpa [#allocation3], 0
    %7 = vsyncpa [#allocation4], 0
    loop: start=0, step=1, limit=4
    $region2: #{tpu_custom_call.1} parent=1 // loop_pre_header
      _
    $region3: #{tpu_custom_call.1} parent=1 // loop_header
      %s9 = sphi 0, %s13
      %p10 = scmp.ge.s32.totalorder %s9, 4
      %s17 = sphi 0, %s17
      %s19 = sphi 0, %s17
      %s20 = sphi 0, %s19
      %s34 = sphi 0, %s20
      %s38 = sphi 0, %s38
      %s40 = sphi 0, %s38
      %s41 = sphi 0, %s40
      %s55 = sphi 0, %s41
    $region4: #{tpu_custom_call.1} parent=1 // loop_header_branch
      %12 = sbr.rel (%p10) target = $region8
    $region5: #{tpu_custom_call.1} parent=1 // loop_body
      %s14 = ssub.s32 %s9, 1
      %s15 = ssub.s32 %s9, 2
      %s16 = sadd.s32 %s9, 1
      %s18 = sadd.s32 %s17, 1
      %p21 = scmp.eq.s32.totalorder %s9, 1
      %p22 = scmp.ne.s32.totalorder %s17, %s19
      %p23 = scmp.eq.s32.totalorder %s9, 0
      %p24 = por %p22, %p23
      %p25 = scmp.ne.s32.totalorder %s17, %s19
      %p26 = scmp.eq.s32.totalorder %s14, 1
      %p27 = por %p25, %p26
      %p28 = scmp.ne.s32.totalorder %s19, %s20
      %p29 = scmp.eq.s32.totalorder %s14, 0
      %p30 = por %p28, %p29
      %p31 = scmp.ne.s32.totalorder %s19, %s20
      %p32 = scmp.eq.s32.totalorder %s15, 1
      %p33 = por %p31, %p32
      %p35 = scmp.ne.s32.totalorder %s20, %s34
      %p36 = scmp.eq.s32.totalorder %s15, 0
      %p37 = por %p35, %p36
      %s39 = sadd.s32 %s38, 1
      %p42 = scmp.eq.s32.totalorder %s9, 1
      %p43 = scmp.ne.s32.totalorder %s38, %s40
      %p44 = scmp.eq.s32.totalorder %s9, 0
      %p45 = por %p43, %p44
      %p46 = scmp.ne.s32.totalorder %s38, %s40
      %p47 = scmp.eq.s32.totalorder %s14, 1
      %p48 = por %p46, %p47
      %p49 = scmp.ne.s32.totalorder %s40, %s41
      %p50 = scmp.eq.s32.totalorder %s14, 0
      %p51 = por %p49, %p50
      %p52 = scmp.ne.s32.totalorder %s40, %s41
      %p53 = scmp.eq.s32.totalorder %s15, 1
      %p54 = por %p52, %p53
      %p56 = scmp.ne.s32.totalorder %s41, %s55
      %p57 = scmp.eq.s32.totalorder %s15, 0
      %p58 = por %p56, %p57
      %p59 = scmp.le.s32.totalorder 1, %s9
      %p60 = scmp.lt.s32.totalorder %s9, 3
      %p61 = pnand %p59, %p60
      %p62 = pneg %p61
      // Predicated region
      $region9: #{tpu_custom_call.1} parent=5 // pred_check
        _
      $region10: #{tpu_custom_call.1} parent=5 // pred_check_branch
        %64 = sbr.rel (%p61) target = $region12
      $region11: #{tpu_custom_call.1} parent=5 // pred_region
        %s65 = ssub.s32 %s9, 1
        // Predicated region
        $region13: #{tpu_custom_call.1} parent=11 // pred_check
          %p66 = pneg %p30
        $region14: #{tpu_custom_call.1} parent=11 // pred_check_branch
          %68 = sbr.rel (%p66) target = $region16
        $region15: #{tpu_custom_call.1} parent=11 // pred_region
          %s70 = ssub.s32 128, 128
          %71 = vsyncadd [#allocation3], %s70
          %s73 = sshll.u32 [#allocation2], 4
          %s74 = int_to_ptr.vmem [resolvable:$true] %s73
          %76 = dma.hbm_to_vmem [thread:$0]  %s0, 128, %s74, [#allocation3]
        $region16: #{tpu_custom_call.1} parent=11 // pred_fallthru
          _
      $region12: #{tpu_custom_call.1} parent=5 // pred_fallthru
        _
      %p77 = scmp.lt.s32.totalorder %s9, 2
      // Predicated region
      $region17: #{tpu_custom_call.1} parent=5 // pred_check
        %p78 = pneg %p77
      $region18: #{tpu_custom_call.1} parent=5 // pred_check_branch
        %80 = sbr.rel (%p78) target = $region20
      $region19: #{tpu_custom_call.1} parent=5 // pred_region
        _
      $region20: #{tpu_custom_call.1} parent=5 // pred_fallthru
        _
      %p81 = scmp.le.s32.totalorder 1, %s9
      %p82 = scmp.lt.s32.totalorder %s9, 3
      %p83 = pnand %p81, %p82
      %p84 = pneg %p83
      // Predicated region
      $region21: #{tpu_custom_call.1} parent=5 // pred_check
        _
      $region22: #{tpu_custom_call.1} parent=5 // pred_check_branch
        %86 = sbr.rel (%p83) target = $region24
      $region23: #{tpu_custom_call.1} parent=5 // pred_region
        %s87 = ssub.s32 %s9, 1
        // Predicated region
        $region25: #{tpu_custom_call.1} parent=23 // pred_check
          %p88 = pneg %p30
        $region26: #{tpu_custom_call.1} parent=23 // pred_check_branch
          %90 = sbr.rel (%p88) target = $region28
        $region27: #{tpu_custom_call.1} parent=23 // pred_region
          %91 = dma.done [#allocation3], 128
        $region28: #{tpu_custom_call.1} parent=23 // pred_fallthru
          _
        %p92 = pneg %p30
        %p93 = pneg %p27
        %p94 = pneg %p51
        %p95 = pneg %p48
        %v96 = vld [vmem:[#allocation2] sm:$0xff]
        %v97 = vmul.f32 %v96, 2.0
        %98 = vst [vmem:[#allocation5] sm:$0xff] %v97
        // Predicated region
        $region29: #{tpu_custom_call.1} parent=23 // pred_check
          %p99 = pneg %p48
        $region30: #{tpu_custom_call.1} parent=23 // pred_check_branch
          %101 = sbr.rel (%p99) target = $region32
        $region31: #{tpu_custom_call.1} parent=23 // pred_region
          %s103 = ssub.s32 128, 128
          %104 = vsyncadd [#allocation4], %s103
          %s106 = sshll.u32 [#allocation5], 4
          %s107 = int_to_ptr.vmem [resolvable:$true] %s106
          %109 = dma.vmem_to_hbm [thread:$0]  %s107, 128, %s1, [#allocation4]
        $region32: #{tpu_custom_call.1} parent=23 // pred_fallthru
          _
        // Predicated region
        $region33: #{tpu_custom_call.1} parent=23 // pred_check
          %p110 = pneg %p48
        $region34: #{tpu_custom_call.1} parent=23 // pred_check_branch
          %112 = sbr.rel (%p110) target = $region36
        $region35: #{tpu_custom_call.1} parent=23 // pred_region
          %113 = dma.done [#allocation4], 128
        $region36: #{tpu_custom_call.1} parent=23 // pred_fallthru
          _
      $region24: #{tpu_custom_call.1} parent=5 // pred_fallthru
        _
      %p114 = scmp.le.s32.totalorder 2, %s9
      // Predicated region
      $region37: #{tpu_custom_call.1} parent=5 // pred_check
        %p115 = pneg %p114
      $region38: #{tpu_custom_call.1} parent=5 // pred_check_branch
        %117 = sbr.rel (%p115) target = $region40
      $region39: #{tpu_custom_call.1} parent=5 // pred_region
        %s118 = ssub.s32 %s9, 2
      $region40: #{tpu_custom_call.1} parent=5 // pred_fallthru
        _
    $region6: #{tpu_custom_call.1} parent=1 // loop_footer
      %s13 = sadd.s32 1, %s9
    $region7: #{tpu_custom_call.1} parent=1 // loop_footer_branch
      %8 = sbr.rel target = $region3
    $region8: #{tpu_custom_call.1} parent=1 // loop_exit
      _
    %119 = vsyncpa [#allocation3], 1
    %s120 = scalar_lea.sflag [#allocation3], 1
    %121 = vsyncpa %s120, 1
    %122 = vsyncpa [#allocation4], 1
    %s123 = scalar_lea.sflag [#allocation4], 1
    %124 = vsyncpa %s123, 1

// kernel: tpu_custom_call.1
$region0: #{tpu_custom_call.1}
  #allocation0 [shape = 'u32[]', space=smem, size = 0x4, offset = 0x4, fixed_abs, tag = 'smem constant byte address 0x4 - core index']
  #allocation1 [shape = 'u32[144,128]{1,0:T(1,128)}', space=vmem, size = 0x12000, scoped, tag = 'internal scratch']
  %s0 = inlined_call_operand.hbm [shape: bf16[2,8,32], index: 0, kind: input, shape index: {}]
  %s1 = inlined_call_operand.hbm [shape: bf16[32,192], index: 1, kind: input, shape index: {}]
  %s2 = inlined_call_operand.hbm [shape: bf16[2,8,192], index: 2, kind: output, shape index: {}]
  %s3 = sld [smem:[#allocation0]]
  $region49: #{tpu_custom_call.1} parent=0
    _
  %s5 = ssub.s32 1, %s3
  %s6 = scalar_select 0, %s5, %s3
  $region1: #{tpu_custom_call.1} parent=0
    #allocation2 [shape = 'u8[4096]{0}', space=vmem, size = 0x1000, scoped, tag = 'input window, operand 0']
    #allocation3 [shape = 's32[2]{0}', space=sflag, size = 0x8, scoped, tag = 'scoped memory for tpu_custom_call.1']
    #allocation4 [shape = 's32[2]{0}', space=sflag, size = 0x8, scoped, tag = 'scoped memory for tpu_custom_call.1']
    #allocation5 [shape = 'u8[16384]{0}', space=vmem, size = 0x4000, scoped, tag = 'input window, operand 1, single buffered']
    #allocation6 [shape = 's32[1]{0}', space=sflag, size = 0x4, scoped, tag = 'scoped memory for tpu_custom_call.1']
    #allocation7 [shape = 'u8[8192]{0}', space=vmem, size = 0x2000, scoped, tag = 'output window, operand 0']
    %7 = vsyncpa [#allocation3], 0
    %s8 = scalar_lea.sflag [#allocation3], 1
    %9 = vsyncpa %s8, 0
    %10 = vsyncpa [#allocation6], 0
    %11 = vsyncpa [#allocation4], 0
    %s12 = scalar_lea.sflag [#allocation4], 1
    %13 = vsyncpa %s12, 0
    loop: start=0, step=1, limit=4
    $region2: #{tpu_custom_call.1} parent=1 // loop_pre_header
      _
    $region3: #{tpu_custom_call.1} parent=1 // loop_header
      %s15 = sphi 0, %s19
      %p16 = scmp.ge.s32.totalorder %s15, 4
      %s22 = sphi 0, %s34
      %s23 = sphi 0, %s30
      %s24 = sphi 0, %s22
      %s25 = sphi 0, %s23
      %s26 = sphi 0, %s24
      %s27 = sphi 0, %s25
      %s39 = sphi 0, %s41
      %s42 = sphi 0, %s39
      %s43 = sphi 0, %s42
      %s59 = sphi 0, %s43
      %s63 = sphi 0, %s63
      %s65 = sphi 0, %s63
      %s66 = sphi 0, %s65
      %s80 = sphi 0, %s66
      %s88 = sphi 0, %s90
      %s91 = sphi 0, %s88
      %s92 = sphi 0, %s91
      %s108 = sphi 0, %s92
    $region4: #{tpu_custom_call.1} parent=1 // loop_header_branch
      %18 = sbr.rel (%p16) target = $region8
    $region5: #{tpu_custom_call.1} parent=1 // loop_body
      %s20 = ssub.s32 %s15, 1
      %s21 = ssub.s32 %s15, 2
      %s28 = sadd.s32 1, %s23
      %p29 = scmp.ge.s32.totalorder %s28, 1
      %s30 = scalar_select %p29, 0, %s28
      %s31 = sadd.s32 1, %s22
      %s32 = scalar_select %p29, %s31, %s22
      %p33 = scmp.ge.s32.totalorder %s32, 2
      %s34 = scalar_select %p33, 0, %s32
      %s35 = ssub.s32 %s22, %s34
      %s36 = ssub.s32 %s23, %s30
      %s37 = sor.u32 %s35, %s36
      %p38 = scmp.eq.s32.totalorder %s37, 0
      %s40 = sadd.s32 %s39, 1
      %s41 = scalar_select %p38, %s39, %s40
      %p44 = pneg %p38
      %p45 = scmp.eq.s32.totalorder %s15, 1
      %p46 = por %p44, %p45
      %p47 = scmp.ne.s32.totalorder %s39, %s42
      %p48 = scmp.eq.s32.totalorder %s15, 0
      %p49 = por %p47, %p48
      %p50 = scmp.ne.s32.totalorder %s39, %s42
      %p51 = scmp.eq.s32.totalorder %s20, 1
      %p52 = por %p50, %p51
      %p53 = scmp.ne.s32.totalorder %s42, %s43
      %p54 = scmp.eq.s32.totalorder %s20, 0
      %p55 = por %p53, %p54
      %p56 = scmp.ne.s32.totalorder %s42, %s43
      %p57 = scmp.eq.s32.totalorder %s21, 1
      %p58 = por %p56, %p57
      %p60 = scmp.ne.s32.totalorder %s43, %s59
      %p61 = scmp.eq.s32.totalorder %s21, 0
      %p62 = por %p60, %p61
      %s64 = sadd.s32 %s63, 1
      %p67 = scmp.eq.s32.totalorder %s15, 1
      %p68 = scmp.ne.s32.totalorder %s63, %s65
      %p69 = scmp.eq.s32.totalorder %s15, 0
      %p70 = por %p68, %p69
      %p71 = scmp.ne.s32.totalorder %s63, %s65
      %p72 = scmp.eq.s32.totalorder %s20, 1
      %p73 = por %p71, %p72
      %p74 = scmp.ne.s32.totalorder %s65, %s66
      %p75 = scmp.eq.s32.totalorder %s20, 0
      %p76 = por %p74, %p75
      %p77 = scmp.ne.s32.totalorder %s65, %s66
      %p78 = scmp.eq.s32.totalorder %s21, 1
      %p79 = por %p77, %p78
      %p81 = scmp.ne.s32.totalorder %s66, %s80
      %p82 = scmp.eq.s32.totalorder %s21, 0
      %p83 = por %p81, %p82
      %s84 = ssub.s32 %s22, %s34
      %s85 = ssub.s32 %s23, %s30
      %s86 = sor.u32 %s84, %s85
      %p87 = scmp.eq.s32.totalorder %s86, 0
      %s89 = sadd.s32 %s88, 1
      %s90 = scalar_select %p87, %s88, %s89
      %p93 = pneg %p87
      %p94 = scmp.eq.s32.totalorder %s15, 1
      %p95 = por %p93, %p94
      %p96 = scmp.ne.s32.totalorder %s88, %s91
      %p97 = scmp.eq.s32.totalorder %s15, 0
      %p98 = por %p96, %p97
      %p99 = scmp.ne.s32.totalorder %s88, %s91
      %p100 = scmp.eq.s32.totalorder %s20, 1
      %p101 = por %p99, %p100
      %p102 = scmp.ne.s32.totalorder %s91, %s92
      %p103 = scmp.eq.s32.totalorder %s20, 0
      %p104 = por %p102, %p103
      %p105 = scmp.ne.s32.totalorder %s91, %s92
      %p106 = scmp.eq.s32.totalorder %s21, 1
      %p107 = por %p105, %p106
      %p109 = scmp.ne.s32.totalorder %s92, %s108
      %p110 = scmp.eq.s32.totalorder %s21, 0
      %p111 = por %p109, %p110
      %p112 = scmp.le.s32.totalorder 1, %s15
      %p113 = scmp.lt.s32.totalorder %s15, 3
      %p114 = pnand %p112, %p113
      %p115 = pneg %p114
      // Predicated region
      $region9: #{tpu_custom_call.1} parent=5 // pred_check
        _
      $region10: #{tpu_custom_call.1} parent=5 // pred_check_branch
        %117 = sbr.rel (%p114) target = $region12
      $region11: #{tpu_custom_call.1} parent=5 // pred_region
        %s118 = ssub.s32 %s15, 1
        // Predicated region
        $region13: #{tpu_custom_call.1} parent=11 // pred_check
          %p119 = pneg %p76
        $region14: #{tpu_custom_call.1} parent=11 // pred_check_branch
          %121 = sbr.rel (%p119) target = $region16
        $region15: #{tpu_custom_call.1} parent=11 // pred_region
          %s123 = ssub.s32 512, 512
          %124 = vsyncadd [#allocation6], %s123
          %s125 = sshll.u32 [#allocation5], 4
          %s126 = int_to_ptr.vmem [resolvable:$true] %s125
          %131 = dma.hbm_to_vmem [thread:$0]  %s1, 512, %s126, [#allocation6], 128, 128, 8
        $region16: #{tpu_custom_call.1} parent=11 // pred_fallthru
          _
      $region12: #{tpu_custom_call.1} parent=5 // pred_fallthru
        _
      %p132 = scmp.lt.s32.totalorder %s15, 2
      // Predicated region
      $region17: #{tpu_custom_call.1} parent=5 // pred_check
        %p133 = pneg %p132
      $region18: #{tpu_custom_call.1} parent=5 // pred_check_branch
        %135 = sbr.rel (%p133) target = $region20
      $region19: #{tpu_custom_call.1} parent=5 // pred_region
        // Predicated region
        $region21: #{tpu_custom_call.1} parent=19 // pred_check
          %p136 = pneg %p49
        $region22: #{tpu_custom_call.1} parent=19 // pred_check_branch
          %138 = sbr.rel (%p136) target = $region24
        $region23: #{tpu_custom_call.1} parent=19 // pred_region
          %s139 = sand.u32 %s39, 1
          %s140 = scalar_lea.sflag [#allocation3], %s139
          %s141 = sand.u32 %s39, 1
          %s142 = smul.addr %s141, 4
          %s143 = scalar_lea.vmem [#allocation2], %s142
          %s145 = ssub.s32 64, 64
          %146 = vsyncadd %s140, %s145
          %s147 = sadd.s32 %s23, %s22
          %s148 = smul.addr %s147, 64
          %s149 = scalar_lea.hbm %s0, %s148
          %s151 = sshll.u32 %s143, 4
          %s152 = int_to_ptr.vmem [resolvable:$true] %s151
          %154 = dma.hbm_to_vmem [thread:$0]  %s149, 64, %s152, %s140
        $region24: #{tpu_custom_call.1} parent=19 // pred_fallthru
          _
      $region20: #{tpu_custom_call.1} parent=5 // pred_fallthru
        _
      %p155 = scmp.le.s32.totalorder 1, %s15
      %p156 = scmp.lt.s32.totalorder %s15, 3
      %p157 = pnand %p155, %p156
      %p158 = pneg %p157
      // Predicated region
      $region25: #{tpu_custom_call.1} parent=5 // pred_check
        _
      $region26: #{tpu_custom_call.1} parent=5 // pred_check_branch
        %160 = sbr.rel (%p157) target = $region28
      $region27: #{tpu_custom_call.1} parent=5 // pred_region
        %s161 = ssub.s32 %s15, 1
        %s162 = sand.u32 %s42, 1
        %s163 = scalar_lea.sflag [#allocation3], %s162
        %s164 = sand.u32 %s42, 1
        %s165 = smul.addr %s164, 4
        %s166 = scalar_lea.vmem [#allocation2], %s165
        // Predicated region
        $region29: #{tpu_custom_call.1} parent=27 // pred_check
          %p167 = pneg %p55
        $region30: #{tpu_custom_call.1} parent=27 // pred_check_branch
          %169 = sbr.rel (%p167) target = $region32
        $region31: #{tpu_custom_call.1} parent=27 // pred_region
          %170 = dma.done %s163, 64
        $region32: #{tpu_custom_call.1} parent=27 // pred_fallthru
          _
        // Predicated region
        $region33: #{tpu_custom_call.1} parent=27 // pred_check
          %p171 = pneg %p76
        $region34: #{tpu_custom_call.1} parent=27 // pred_check_branch
          %173 = sbr.rel (%p171) target = $region36
        $region35: #{tpu_custom_call.1} parent=27 // pred_region
          %174 = dma.done [#allocation6], 512
        $region36: #{tpu_custom_call.1} parent=27 // pred_fallthru
          _
        %s175 = sand.u32 %s42, 1
        %s176 = scalar_lea.sflag [#allocation3], %s175
        %s177 = sand.u32 %s42, 1
        %s178 = smul.addr %s177, 4
        %s179 = scalar_lea.vmem [#allocation2], %s178
        %p180 = pneg %p55
        %p181 = pneg %p52
        %p182 = pneg %p76
        %p183 = pneg %p73
        %p184 = pneg %p104
        %p185 = pneg %p101
        %s186 = sand.u32 %s91, 1
        %s187 = scalar_lea.sflag [#allocation4], %s186
        %s188 = sand.u32 %s91, 1
        %s189 = smul.addr %s188, 8
        %s190 = scalar_lea.vmem [#allocation7], %s189
        %v192 = vld [vmem:[%s166] sm:$0xf]
        %v193 = vld [vmem:[#allocation5] sm:$0xff]
        %v194 = vld [vmem:[#allocation5 + $0x8] sm:$0xff]
        %v195 = vld [vmem:[#allocation5 + $0x10] sm:$0xff]
        %v196 = vld [vmem:[#allocation5 + $0x18] sm:$0xff]
        %v201 = vunpack.c.l.b16 %v193
        %v202 = vunpack.c.h.b16 %v193
        %v203 = vunpack.c.l.b16 %v194
        %v204 = vunpack.c.h.b16 %v194
        %v205 = vunpack.c.l.b16 %v195
        %v206 = vunpack.c.h.b16 %v195
        %v207 = vunpack.c.l.b16 %v196
        %v208 = vunpack.c.h.b16 %v196
        %v209 = vpack.c.b16 %v203, %v201
        %v210 = vpack.c.b16 %v204, %v202
        %v211 = vpack.c.b16 %v207, %v205
        %v212 = vpack.c.b16 %v208, %v206
        %vm217 = vcmask 261120
        %v219 = vsel %vm217, %v192, 0
        %221 = vmatprep.subr.bf16.mxu0 0
        %222 = vmatpush1.bf16.msra.mxu0 0
        %223 = vmatprep.subr.bf16.mxu0 0
        %224 = vmatpush1.bf16.msra.mxu0 0
        %225 = vmatprep.subr.bf16.mxu0 0
        %226 = vmatpush1.bf16.msra.mxu0 0
        %227 = vmatprep.subr.bf16.mxu0 0
        %228 = vmatpush1.bf16.msra.mxu0 0
        %229 = vmatprep.subr.bf16.mxu0 0
        %230 = vmatpush1.bf16.msra.mxu0 0
        %231 = vmatprep.subr.bf16.mxu0 0
        %232 = vmatpush1.bf16.msra.mxu0 0
        %233 = vmatprep.subr.bf16.mxu0 %v212
        %234 = vmatpush1.bf16.msra.mxu0 %v211
        %235 = vmatprep.subr.bf16.mxu0 %v210
        %236 = vmatpush1.bf16.msra.mxu0 %v209
        %237 = vmatprep.subr.bf16.mxu0 0
        %238 = vmatpush2.bf16.msra.mxu0 0
        %239 = vmatprep.subr.bf16.mxu0 0
        %240 = vmatpush2.bf16.msra.mxu0 0
        %241 = vmatprep.subr.bf16.mxu0 0
        %242 = vmatpush2.bf16.msra.mxu0 0
        %243 = vmatprep.subr.bf16.mxu0 0
        %244 = vmatpush2.bf16.msra.mxu0 0
        %245 = vmatprep.subr.bf16.mxu0 0
        %246 = vmatpush2.bf16.msra.mxu0 0
        %247 = vmatprep.subr.bf16.mxu0 0
        %248 = vmatpush2.bf16.msra.mxu0 0
        %249 = vmatprep.subr.bf16.mxu0 0
        %250 = vmatpush2.bf16.msra.mxu0 0
        %251 = vmatprep.subr.bf16.mxu0 0
        %252 = vmatpush2.bf16.msra.mxu0 0
        %253 = vmatprep.mubr.bf16.mxu0 0
        %254 = vmatmul.mubr.bf16.gmra.mxu0 %v219
        %v255 = vpop.f32.mrf.mxu0
        %v256 = vadd.f32 0.0, %v255
        %v257 = vpop.f32.mrf.mxu0
        %v258 = vadd.f32 0.0, %v257
        %v259 = vpop.f32.mrf.mxu0
        %v260 = vpop.f32.mrf.mxu0
        %261 = vdwg.mxu0
        %v262 = vpack.c.bf16 %v256, %v256
        %v263 = vpack.c.bf16 %v258, %v258
        %v266 = vunpack.c.l.b16 %v262
        %v267 = vunpack.c.l.b16 %v263
        %v268 = vpack.c.b16 %v267, %v266
        %vm270 = vcmask 1043456
        %vm271 = vcmask 523268
        %vm272 = vmor %vm271, %vm270
        %273 = vst.msk [vmem:[%s190] sm:$0xff] %vm272, %v268
        %s274 = sand.u32 %s91, 1
        %s275 = scalar_lea.sflag [#allocation4], %s274
        %s276 = sand.u32 %s91, 1
        %s277 = smul.addr %s276, 8
        %s278 = scalar_lea.vmem [#allocation7], %s277
        // Predicated region
        $region37: #{tpu_custom_call.1} parent=27 // pred_check
          %p279 = pneg %p101
        $region38: #{tpu_custom_call.1} parent=27 // pred_check_branch
          %281 = sbr.rel (%p279) target = $region40
        $region39: #{tpu_custom_call.1} parent=27 // pred_region
          %s283 = ssub.s32 128, 128
          %284 = vsyncadd %s275, %s283
          %s285 = smul.addr %s25, 2
          %s286 = smul.addr %s24, 2
          %s287 = sadd.s32 %s285, %s286
          %s288 = smul.addr %s287, 64
          %s289 = scalar_lea.hbm %s2, %s288
          %s291 = sshll.u32 %s278, 4
          %s292 = int_to_ptr.vmem [resolvable:$true] %s291
          %294 = dma.vmem_to_hbm [thread:$0]  %s292, 128, %s289, %s275
        $region40: #{tpu_custom_call.1} parent=27 // pred_fallthru
          _
      $region28: #{tpu_custom_call.1} parent=5 // pred_fallthru
        _
      %p295 = scmp.le.s32.totalorder 2, %s15
      // Predicated region
      $region41: #{tpu_custom_call.1} parent=5 // pred_check
        %p296 = pneg %p295
      $region42: #{tpu_custom_call.1} parent=5 // pred_check_branch
        %298 = sbr.rel (%p296) target = $region44
      $region43: #{tpu_custom_call.1} parent=5 // pred_region
        %s299 = ssub.s32 %s15, 2
        // Predicated region
        $region45: #{tpu_custom_call.1} parent=43 // pred_check
          %p300 = pneg %p107
        $region46: #{tpu_custom_call.1} parent=43 // pred_check_branch
          %302 = sbr.rel (%p300) target = $region48
        $region47: #{tpu_custom_call.1} parent=43 // pred_region
          %s303 = sand.u32 %s92, 1
          %s304 = scalar_lea.sflag [#allocation4], %s303
          %s305 = sand.u32 %s92, 1
          %s306 = smul.addr %s305, 8
          %s307 = scalar_lea.vmem [#allocation7], %s306
          %308 = dma.done %s304, 128
        $region48: #{tpu_custom_call.1} parent=43 // pred_fallthru
          _
      $region44: #{tpu_custom_call.1} parent=5 // pred_fallthru
        _
    $region6: #{tpu_custom_call.1} parent=1 // loop_footer
      %s19 = sadd.s32 1, %s15
    $region7: #{tpu_custom_call.1} parent=1 // loop_footer_branch
      %14 = sbr.rel target = $region3
    $region8: #{tpu_custom_call.1} parent=1 // loop_exit
      _
    %309 = vsyncpa [#allocation3], 1
    %s310 = scalar_lea.sflag [#allocation3], 1
    %311 = vsyncpa %s310, 1
    %312 = vsyncpa [#allocation6], 1
    %313 = vsyncpa [#allocation4], 1
    %s314 = scalar_lea.sflag [#allocation4], 1
    %315 = vsyncpa %s314, 1

</llo_original>
